<compile_context>
chip_gen: v5e
topology: v5e:2x2
jax: 0.10.0
libtpu: 0.0.40
codegen_flags: <defaults>
</compile_context>

<pallas_src>
import functools

import jax
import jax.numpy as jnp
from jax.experimental import pallas as pl
from jax.experimental.pallas import tpu as pltpu


_VMEM_LIMIT_BYTES = 32 * 1024 * 1024        # scoped-VMEM limit (safe on v5e/v6e/v7x)
_FUSED_MAX_BLOCK_BYTES = 6 * 1024 * 1024    # per-batch resident slab budget (fused path)
_SCALE_TILE_BUDGET_BYTES = 2 * 1024 * 1024  # per-tile byte budget (split path)


# ---------------------------------------------------------------------------
# Fused path: pool + Conv1d(1,1,3) + sigmoid + scale in a single kernel.
# ---------------------------------------------------------------------------
def _eca_fused_kernel(w_ref, x_ref, o_ref, *, inv_hw, c):
    # w_ref: SMEM (4,) f32 -> [w_left, w_center, w_right, bias] of Conv1d(1,1,3)
    # x_ref / o_ref: VMEM (1, C, HW), input's native dtype.
    x = x_ref[0]                                                     # (C, HW) native

    # Global average pool over the spatial (lane) axis.  f32 accumulation only;
    # the slab itself is not upcast/materialized in f32.
    pooled = jnp.sum(x, axis=-1, keepdims=True,
                     dtype=jnp.float32) * inv_hw                     # (C, 1) f32

    # Conv1d(1, 1, kernel_size=3, padding=1) along the channel (sublane) axis.
    # Tiny (C, 1) vector -> negligible cost; keep the proven slice form.
    zero = jnp.zeros((1, 1), dtype=jnp.float32)
    p = jnp.concatenate([zero, pooled, zero], axis=0)                # (C+2, 1)
    y = (w_ref[0] * p[0:c, :]
         + w_ref[1] * p[1:c + 1, :]
         + w_ref[2] * p[2:c + 2, :]
         + w_ref[3])                                                 # (C, 1) f32

    gate = jax.nn.sigmoid(y)                                         # (C, 1) f32

    # Broadcast scale in the native dtype (bf16 stays bf16 on v6e/v7x); the
    # store is full-width lane-dense (HW on the lane axis).
    o_ref[0] = (x * gate.astype(x.dtype)).astype(o_ref.dtype)


def _eca_fused(x_flat, w_packed):
    B, C, HW = x_flat.shape
    itemsize = x_flat.dtype.itemsize
    kernel = functools.partial(_eca_fused_kernel, inv_hw=1.0 / HW, c=C)
    return pl.pallas_call(
        kernel,
        out_shape=jax.ShapeDtypeStruct((B, C, HW), x_flat.dtype),
        grid=(B,),
        in_specs=[
            pl.BlockSpec(memory_space=pltpu.SMEM),                # conv params
            pl.BlockSpec((1, C, HW), lambda b: (b, 0, 0)),        # per-batch slab
        ],
        out_specs=pl.BlockSpec((1, C, HW), lambda b: (b, 0, 0)),
        compiler_params=pltpu.CompilerParams(
            dimension_semantics=("parallel",),
            vmem_limit_bytes=_VMEM_LIMIT_BYTES),
        cost_estimate=pl.CostEstimate(
            flops=3 * B * C * HW,                  # pool adds + gate multiply
            transcendentals=B * C,                 # sigmoid
            bytes_accessed=2 * B * C * HW * itemsize),
    )(w_packed, x_flat)


# ---------------------------------------------------------------------------
# Split path: tiny XLA gate pre-pass + lane-dense Pallas scale kernel.
# ---------------------------------------------------------------------------
def _eca_scale_kernel(g_ref, x_ref, o_ref):
    # g_ref: VMEM (1, TC, 1) f32 gate; x_ref / o_ref: VMEM (1, TC, THW) native dtype.
    x = x_ref[0]
    o_ref[0] = (x * g_ref[0].astype(x.dtype)).astype(o_ref.dtype)


def _pick_scale_tiles(c, hw, itemsize):
    # Channel tile: the full C (always a legal block dim) when small, else a
    # multiple of 8.
    tc = c if c <= 256 else 256
    # Spatial tile: full HW when it fits the byte budget, else the largest
    # multiple of 128 within budget (lane-dense stores either way).
    if tc * hw * itemsize <= _SCALE_TILE_BUDGET_BYTES:
        thw = hw
    else:
        thw = max(128, (_SCALE_TILE_BUDGET_BYTES // (tc * itemsize)) // 128 * 128)
    return tc, thw


def _eca_split(x_flat, conv_weight, conv_bias):
    B, C, HW = x_flat.shape
    itemsize = x_flat.dtype.itemsize

    # Phase 1 (tiny, plain XLA): gate = sigmoid(conv1d(gap(x))).
    pooled = jnp.mean(x_flat, axis=-1, dtype=jnp.float32)            # (B, C)
    p = jnp.pad(pooled, ((0, 0), (1, 1)))                            # (B, C+2)
    w = conv_weight.astype(jnp.float32)
    y = (w[0] * p[:, 0:C] + w[1] * p[:, 1:C + 1] + w[2] * p[:, 2:C + 2]
         + jnp.asarray(conv_bias, jnp.float32))
    gate = jax.nn.sigmoid(y).reshape(B, C, 1)                        # (B, C, 1) f32

    # Phase 2: Pallas scale kernel, big lane-dense tiles, fully parallel grid
    # (gives v7x's two TensorCores work even when B is small).
    tc, thw = _pick_scale_tiles(C, HW, itemsize)
    grid = (B, pl.cdiv(C, tc), pl.cdiv(HW, thw))
    return pl.pallas_call(
        _eca_scale_kernel,
        out_shape=jax.ShapeDtypeStruct((B, C, HW), x_flat.dtype),
        grid=grid,
        in_specs=[
            pl.BlockSpec((1, tc, 1), lambda b, ci, hj: (b, ci, 0)),
            pl.BlockSpec((1, tc, thw), lambda b, ci, hj: (b, ci, hj)),
        ],
        out_specs=pl.BlockSpec((1, tc, thw), lambda b, ci, hj: (b, ci, hj)),
        compiler_params=pltpu.CompilerParams(
            dimension_semantics=("parallel", "parallel", "parallel"),
            vmem_limit_bytes=_VMEM_LIMIT_BYTES),
        cost_estimate=pl.CostEstimate(
            flops=B * C * HW,
            transcendentals=0,
            bytes_accessed=2 * B * C * HW * itemsize),
    )(gate, x_flat)


# ---------------------------------------------------------------------------
# Public wrapper.
# ---------------------------------------------------------------------------
def eca_forward(x, conv_weight, conv_bias, *, force_split=False):
    """ECA forward. x: (B, C, H, W); conv_weight: (3,); conv_bias: scalar."""
    B, C, H, W = x.shape
    HW = H * W
    x_flat = x.reshape(B, C, HW)
    block_bytes = C * HW * x.dtype.itemsize

    if force_split or block_bytes > _FUSED_MAX_BLOCK_BYTES:
        out_flat = _eca_split(x_flat, conv_weight, conv_bias)
    else:
        w_packed = jnp.concatenate(
            [conv_weight.astype(jnp.float32).reshape(3),
             jnp.asarray(conv_bias, jnp.float32).reshape(1)])        # (4,)
        out_flat = _eca_fused(x_flat, w_packed)

    return out_flat.reshape(B, C, H, W)


def eca_reference(x, conv_weight, conv_bias):
    """Pure-JAX reference matching the PyTorch forward."""
    pooled = jnp.mean(x, axis=(2, 3))                                # (B, C)
    p = jnp.pad(pooled, ((0, 0), (1, 1)))                            # (B, C+2)
    C = x.shape[1]
    y = (conv_weight[0] * p[:, 0:C]
         + conv_weight[1] * p[:, 1:C + 1]
         + conv_weight[2] * p[:, 2:C + 2]
         + conv_bias)                                                # (B, C)
    gate = jax.nn.sigmoid(y)[:, :, None, None]                       # (B, C, 1, 1)
    return x * gate


if __name__ == "__main__":
    key = jax.random.PRNGKey(0)
    kx, kw, kb = jax.random.split(key, 3)

    B, C, H, W = 2, 4, 16, 16
    x = jax.random.normal(kx, (B, C, H, W), dtype=jnp.float32)

    # Deterministic Conv1d(1, 1, 3) parameters (synthetic init, no checkpoint).
    conv_weight = jax.random.normal(kw, (3,), dtype=jnp.float32) * 0.5
    conv_bias = jax.random.normal(kb, (), dtype=jnp.float32) * 0.1

    ref = eca_reference(x, conv_weight, conv_bias)

    # Fused single-pass path (used for slabs that fit the VMEM budget).
    out_fused = jax.block_until_ready(eca_forward(x, conv_weight, conv_bias))
    assert out_fused.shape == (B, C, H, W)
    assert jnp.allclose(out_fused, ref, atol=1e-5, rtol=1e-5), "fused path mismatch"

    # Split path (gate pre-pass + scale kernel), as used for large C*H*W.
    out_split = jax.block_until_ready(
        eca_forward(x, conv_weight, conv_bias, force_split=True))
    assert jnp.allclose(out_split, ref, atol=1e-5, rtol=1e-5), "split path mismatch"

    print("KERNEL_OK")
</pallas_src>

<mosaic_0001>
module attributes {stable_mosaic.version = 11 : i64} {
  func.func @_eca_fused_kernel(%arg0: i32, %arg1: memref<4xf32, #tpu.memory_space<smem>>, %arg2: memref<1x4x256xf32, #tpu.memory_space<vmem>>, %arg3: memref<1x4x256xf32, #tpu.memory_space<vmem>>) attributes {dimension_semantics = [#tpu.dimension_semantics<parallel>], iteration_bounds = array<i64: 2>, scalar_prefetch = 0 : i64, scratch_operands = 0 : i64, tpu.core_type = #tpu.core_type<tc>, window_params = [{transform_indices = @transform_0, window_bounds = array<i64: 4>}, {transform_indices = @transform_1, window_bounds = array<i64: 1, 4, 256>}, {transform_indices = @transform_2, window_bounds = array<i64: 1, 4, 256>}]} {
    %c0 = arith.constant 0 : index
    %c0_0 = arith.constant 0 : index
    %c0_1 = arith.constant 0 : index
    %0 = vector.load %arg2[%c0, %c0_0, %c0_1] : memref<1x4x256xf32, #tpu.memory_space<vmem>>, vector<1x4x256xf32>
    %1 = vector.shape_cast %0 : vector<1x4x256xf32> to vector<4x256xf32>
    %cst = arith.constant dense<0.000000e+00> : vector<4xf32>
    %2 = vector.multi_reduction <add>, %1, %cst [1] : vector<4x256xf32> to vector<4xf32>
    %3 = vector.shape_cast %2 : vector<4xf32> to vector<4x1xf32>
    %cst_2 = arith.constant 3.906250e-03 : f32
    %4 = vector.broadcast %cst_2 : f32 to vector<4x1xf32>
    %5 = arith.mulf %3, %4 : vector<4x1xf32>
    %cst_3 = arith.constant 0.000000e+00 : f32
    %6 = vector.broadcast %cst_3 : f32 to vector<1x1xf32>
    %7 = tpu.concatenate %6, %5, %6 in 0 : vector<1x1xf32>, vector<4x1xf32>, vector<1x1xf32> -> vector<6x1xf32>
    %c0_4 = arith.constant 0 : index
    %8 = memref.load %arg1[%c0_4] : memref<4xf32, #tpu.memory_space<smem>>
    %9 = vector.extract_strided_slice %7 {offsets = [0, 0], sizes = [4, 1], strides = [1, 1]} : vector<6x1xf32> to vector<4x1xf32>
    %10 = vector.broadcast %8 : f32 to vector<4x1xf32>
    %11 = arith.mulf %10, %9 : vector<4x1xf32>
    %c1 = arith.constant 1 : index
    %12 = memref.load %arg1[%c1] : memref<4xf32, #tpu.memory_space<smem>>
    %13 = vector.extract_strided_slice %7 {offsets = [1, 0], sizes = [4, 1], strides = [1, 1]} : vector<6x1xf32> to vector<4x1xf32>
    %14 = vector.broadcast %12 : f32 to vector<4x1xf32>
    %15 = arith.mulf %14, %13 : vector<4x1xf32>
    %16 = arith.addf %11, %15 : vector<4x1xf32>
    %c2 = arith.constant 2 : index
    %17 = memref.load %arg1[%c2] : memref<4xf32, #tpu.memory_space<smem>>
    %18 = vector.extract_strided_slice %7 {offsets = [2, 0], sizes = [4, 1], strides = [1, 1]} : vector<6x1xf32> to vector<4x1xf32>
    %19 = vector.broadcast %17 : f32 to vector<4x1xf32>
    %20 = arith.mulf %19, %18 : vector<4x1xf32>
    %21 = arith.addf %16, %20 : vector<4x1xf32>
    %c3 = arith.constant 3 : index
    %22 = memref.load %arg1[%c3] : memref<4xf32, #tpu.memory_space<smem>>
    %23 = vector.broadcast %22 : f32 to vector<4x1xf32>
    %24 = arith.addf %21, %23 : vector<4x1xf32>
    %25 = arith.negf %24 : vector<4x1xf32>
    %26 = math.exp %25 : vector<4x1xf32>
    %cst_5 = arith.constant 1.000000e+00 : f32
    %27 = vector.broadcast %cst_5 : f32 to vector<4x1xf32>
    %28 = arith.addf %27, %26 : vector<4x1xf32>
    %29 = arith.divf %27, %28 : vector<4x1xf32>
    %30 = vector.broadcast %29 : vector<4x1xf32> to vector<4x256xf32>
    %31 = arith.mulf %1, %30 : vector<4x256xf32>
    %c0_6 = arith.constant 0 : index
    %c0_7 = arith.constant 0 : index
    %c0_8 = arith.constant 0 : index
    %32 = vector.load %arg3[%c0_6, %c0_7, %c0_8] : memref<1x4x256xf32, #tpu.memory_space<vmem>>, vector<1x4x256xf32>
    %33 = vector.shape_cast %32 : vector<1x4x256xf32> to vector<4x256xf32>
    %34 = vector.shape_cast %31 : vector<4x256xf32> to vector<1x4x256xf32>
    tpu.vector_store %arg3[%c0_6, %c0_7, %c0_8], %34 {strides = array<i32>} : memref<1x4x256xf32, #tpu.memory_space<vmem>>, vector<1x4x256xf32>,
    return
  }
  func.func @transform_0(%arg0: i32) -> i32 {
    %c0_i32 = arith.constant 0 : i32
    %c0_i32_0 = arith.constant 0 : i32
    return %c0_i32 : i32
  }
  func.func @transform_1(%arg0: i32) -> (i32, i32, i32) {
    %c0_i32 = arith.constant 0 : i32
    %c0_i32_0 = arith.constant 0 : i32
    %c0_i32_1 = arith.constant 0 : i32
    return %arg0, %c0_i32, %c0_i32_0 : i32, i32, i32
  }
  func.func @transform_2(%arg0: i32) -> (i32, i32, i32) {
    %c0_i32 = arith.constant 0 : i32
    %c0_i32_0 = arith.constant 0 : i32
    %c0_i32_1 = arith.constant 0 : i32
    return %arg0, %c0_i32, %c0_i32_0 : i32, i32, i32
  }
}

</mosaic_0001>

<llo_original>
// kernel: tpu_custom_call.1
$region0: #{tpu_custom_call.1}
  #allocation0 [shape = 'u32[]', space=smem, size = 0x4, offset = 0x4, fixed_abs, tag = 'smem constant byte address 0x4 - core index']
  #allocation1 [shape = 'u32[72,128]{1,0:T(1,128)}', space=vmem, size = 0x9000, scoped, tag = 'internal scratch']
  %s0 = inlined_call_operand.hbm [shape: f32[4], index: 0, kind: input, shape index: {}]
  %s1 = inlined_call_operand.hbm [shape: f32[2,4,256], index: 1, kind: input, shape index: {}]
  %s2 = inlined_call_operand.hbm [shape: f32[2,4,256], index: 2, kind: output, shape index: {}]
  %s3 = sld [smem:[#allocation0]]
  $region49: #{tpu_custom_call.1} parent=0
    _
  %s5 = ssub.s32 1, %s3
  %s6 = scalar_select 0, %s5, %s3
  $region1: #{tpu_custom_call.1} parent=0
    #allocation2 [shape = 'u8[512]{0}', space=smem, size = 0x200, scoped, tag = 'input window, operand 0, single buffered']
    #allocation3 [shape = 's32[2]{0}', space=sflag, size = 0x8, scoped, tag = 'scoped memory for tpu_custom_call.1']
    #allocation4 [shape = 's32[2]{0}', space=sflag, size = 0x8, scoped, tag = 'scoped memory for tpu_custom_call.1']
    #allocation5 [shape = 's32[2]{0}', space=sflag, size = 0x8, scoped, tag = 'scoped memory for tpu_custom_call.1']
    #allocation6 [shape = 'u8[8192]{0}', space=vmem, size = 0x2000, scoped, tag = 'input window, operand 1']
    #allocation7 [shape = 'u8[8192]{0}', space=vmem, size = 0x2000, scoped, tag = 'output window, operand 0']
    %7 = vsyncpa [#allocation5], 0
    %8 = vsyncpa [#allocation3], 0
    %s9 = scalar_lea.sflag [#allocation3], 1
    %10 = vsyncpa %s9, 0
    %11 = vsyncpa [#allocation4], 0
    %s12 = scalar_lea.sflag [#allocation4], 1
    %13 = vsyncpa %s12, 0
    loop: start=0, step=1, limit=4
    $region2: #{tpu_custom_call.1} parent=1 // loop_pre_header
      _
    $region3: #{tpu_custom_call.1} parent=1 // loop_header
      %s15 = sphi 0, %s19
      %p16 = scmp.ge.s32.totalorder %s15, 4
      %s23 = sphi 0, %s23
      %s25 = sphi 0, %s23
      %s26 = sphi 0, %s25
      %s40 = sphi 0, %s26
      %s46 = sphi 0, %s48
      %s49 = sphi 0, %s46
      %s50 = sphi 0, %s49
      %s66 = sphi 0, %s50
      %s72 = sphi 0, %s74
      %s75 = sphi 0, %s72
      %s76 = sphi 0, %s75
      %s92 = sphi 0, %s76
    $region4: #{tpu_custom_call.1} parent=1 // loop_header_branch
      %18 = sbr.rel (%p16) target = $region8
    $region5: #{tpu_custom_call.1} parent=1 // loop_body
      %s20 = ssub.s32 %s15, 1
      %s21 = ssub.s32 %s15, 2
      %s22 = sadd.s32 %s15, 1
      %s24 = sadd.s32 %s23, 1
      %p27 = scmp.eq.s32.totalorder %s15, 1
      %p28 = scmp.ne.s32.totalorder %s23, %s25
      %p29 = scmp.eq.s32.totalorder %s15, 0
      %p30 = por %p28, %p29
      %p31 = scmp.ne.s32.totalorder %s23, %s25
      %p32 = scmp.eq.s32.totalorder %s20, 1
      %p33 = por %p31, %p32
      %p34 = scmp.ne.s32.totalorder %s25, %s26
      %p35 = scmp.eq.s32.totalorder %s20, 0
      %p36 = por %p34, %p35
      %p37 = scmp.ne.s32.totalorder %s25, %s26
      %p38 = scmp.eq.s32.totalorder %s21, 1
      %p39 = por %p37, %p38
      %p41 = scmp.ne.s32.totalorder %s26, %s40
      %p42 = scmp.eq.s32.totalorder %s21, 0
      %p43 = por %p41, %p42
      %s44 = ssub.s32 %s15, %s22
      %p45 = scmp.eq.s32.totalorder %s44, 0
      %s47 = sadd.s32 %s46, 1
      %s48 = scalar_select %p45, %s46, %s47
      %p51 = pneg %p45
      %p52 = scmp.eq.s32.totalorder %s15, 1
      %p53 = por %p51, %p52
      %p54 = scmp.ne.s32.totalorder %s46, %s49
      %p55 = scmp.eq.s32.totalorder %s15, 0
      %p56 = por %p54, %p55
      %p57 = scmp.ne.s32.totalorder %s46, %s49
      %p58 = scmp.eq.s32.totalorder %s20, 1
      %p59 = por %p57, %p58
      %p60 = scmp.ne.s32.totalorder %s49, %s50
      %p61 = scmp.eq.s32.totalorder %s20, 0
      %p62 = por %p60, %p61
      %p63 = scmp.ne.s32.totalorder %s49, %s50
      %p64 = scmp.eq.s32.totalorder %s21, 1
      %p65 = por %p63, %p64
      %p67 = scmp.ne.s32.totalorder %s50, %s66
      %p68 = scmp.eq.s32.totalorder %s21, 0
      %p69 = por %p67, %p68
      %s70 = ssub.s32 %s15, %s22
      %p71 = scmp.eq.s32.totalorder %s70, 0
      %s73 = sadd.s32 %s72, 1
      %s74 = scalar_select %p71, %s72, %s73
      %p77 = pneg %p71
      %p78 = scmp.eq.s32.totalorder %s15, 1
      %p79 = por %p77, %p78
      %p80 = scmp.ne.s32.totalorder %s72, %s75
      %p81 = scmp.eq.s32.totalorder %s15, 0
      %p82 = por %p80, %p81
      %p83 = scmp.ne.s32.totalorder %s72, %s75
      %p84 = scmp.eq.s32.totalorder %s20, 1
      %p85 = por %p83, %p84
      %p86 = scmp.ne.s32.totalorder %s75, %s76
      %p87 = scmp.eq.s32.totalorder %s20, 0
      %p88 = por %p86, %p87
      %p89 = scmp.ne.s32.totalorder %s75, %s76
      %p90 = scmp.eq.s32.totalorder %s21, 1
      %p91 = por %p89, %p90
      %p93 = scmp.ne.s32.totalorder %s76, %s92
      %p94 = scmp.eq.s32.totalorder %s21, 0
      %p95 = por %p93, %p94
      %p96 = scmp.le.s32.totalorder 1, %s15
      %p97 = scmp.lt.s32.totalorder %s15, 3
      %p98 = pnand %p96, %p97
      %p99 = pneg %p98
      // Predicated region
      $region9: #{tpu_custom_call.1} parent=5 // pred_check
        _
      $region10: #{tpu_custom_call.1} parent=5 // pred_check_branch
        %101 = sbr.rel (%p98) target = $region12
      $region11: #{tpu_custom_call.1} parent=5 // pred_region
        %s102 = ssub.s32 %s15, 1
        // Predicated region
        $region13: #{tpu_custom_call.1} parent=11 // pred_check
          %p103 = pneg %p36
        $region14: #{tpu_custom_call.1} parent=11 // pred_check_branch
          %105 = sbr.rel (%p103) target = $region16
        $region15: #{tpu_custom_call.1} parent=11 // pred_region
          %107 = vsyncadd [#allocation5], 0
          %s109 = sshll.u32 %s0, 4
          %s110 = int_to_ptr.hbm [resolvable:$true] %s109
          %112 = dma.hbm_to_smem %s110, 16, [#allocation2], [#allocation5]
        $region16: #{tpu_custom_call.1} parent=11 // pred_fallthru
          _
      $region12: #{tpu_custom_call.1} parent=5 // pred_fallthru
        _
      %p113 = scmp.lt.s32.totalorder %s15, 2
      // Predicated region
      $region17: #{tpu_custom_call.1} parent=5 // pred_check
        %p114 = pneg %p113
      $region18: #{tpu_custom_call.1} parent=5 // pred_check_branch
        %116 = sbr.rel (%p114) target = $region20
      $region19: #{tpu_custom_call.1} parent=5 // pred_region
        // Predicated region
        $region21: #{tpu_custom_call.1} parent=19 // pred_check
          %p117 = pneg %p56
        $region22: #{tpu_custom_call.1} parent=19 // pred_check_branch
          %119 = sbr.rel (%p117) target = $region24
        $region23: #{tpu_custom_call.1} parent=19 // pred_region
          %s120 = sand.u32 %s46, 1
          %s121 = scalar_lea.sflag [#allocation3], %s120
          %s122 = sand.u32 %s46, 1
          %s123 = smul.addr %s122, 8
          %s124 = scalar_lea.vmem [#allocation6], %s123
          %126 = vsyncadd %s121, 0
          %s127 = smul.addr %s15, 2
          %s128 = smul.addr %s127, 4
          %s129 = scalar_lea.hbm %s1, %s128
          %s131 = sshll.u32 %s129, 4
          %s132 = int_to_ptr.hbm [resolvable:$true] %s131
          %s133 = sshll.u32 %s124, 4
          %s134 = int_to_ptr.vmem [resolvable:$true] %s133
          %136 = dma.hbm_to_vmem [thread:$0]  %s132, 128, %s134, %s121
        $region24: #{tpu_custom_call.1} parent=19 // pred_fallthru
          _
      $region20: #{tpu_custom_call.1} parent=5 // pred_fallthru
        _
      %p137 = scmp.le.s32.totalorder 1, %s15
      %p138 = scmp.lt.s32.totalorder %s15, 3
      %p139 = pnand %p137, %p138
      %p140 = pneg %p139
      // Predicated region
      $region25: #{tpu_custom_call.1} parent=5 // pred_check
        _
      $region26: #{tpu_custom_call.1} parent=5 // pred_check_branch
        %142 = sbr.rel (%p139) target = $region28
      $region27: #{tpu_custom_call.1} parent=5 // pred_region
        %s143 = ssub.s32 %s15, 1
        // Predicated region
        $region29: #{tpu_custom_call.1} parent=27 // pred_check
          %p144 = pneg %p36
        $region30: #{tpu_custom_call.1} parent=27 // pred_check_branch
          %146 = sbr.rel (%p144) target = $region32
        $region31: #{tpu_custom_call.1} parent=27 // pred_region
          %148 = dma.done [#allocation5], 16
        $region32: #{tpu_custom_call.1} parent=27 // pred_fallthru
          _
        %s149 = sand.u32 %s49, 1
        %s150 = scalar_lea.sflag [#allocation3], %s149
        %s151 = sand.u32 %s49, 1
        %s152 = smul.addr %s151, 8
        %s153 = scalar_lea.vmem [#allocation6], %s152
        // Predicated region
        $region33: #{tpu_custom_call.1} parent=27 // pred_check
          %p154 = pneg %p62
        $region34: #{tpu_custom_call.1} parent=27 // pred_check_branch
          %156 = sbr.rel (%p154) target = $region36
        $region35: #{tpu_custom_call.1} parent=27 // pred_region
          %158 = dma.done %s150, 128
        $region36: #{tpu_custom_call.1} parent=27 // pred_fallthru
          _
        %159 = sfence
        %p160 = pneg %p36
        %p161 = pneg %p33
        %s162 = sand.u32 %s49, 1
        %s163 = scalar_lea.sflag [#allocation3], %s162
        %s164 = sand.u32 %s49, 1
        %s165 = smul.addr %s164, 8
        %s166 = scalar_lea.vmem [#allocation6], %s165
        %p167 = pneg %p62
        %p168 = pneg %p59
        %p169 = pneg %p88
        %p170 = pneg %p85
        %s171 = sand.u32 %s75, 1
        %s172 = scalar_lea.sflag [#allocation4], %s171
        %s173 = sand.u32 %s75, 1
        %s174 = smul.addr %s173, 8
        %s175 = scalar_lea.vmem [#allocation7], %s174
        %v176 = vld [vmem:[%s153] sm:$0xff]
        %178 = vst [vmem:[#allocation1] ss:$2 sm:$0xff] %v176
        %v179 = vld.sshfl [vmem:[#allocation1] sm:$0xff pattern:$0x75316420]
        %v180 = vld.sshfl [vmem:[#allocation1 + $0x8] sm:$0xff pattern:$0x75316420]
        %vm183 = vcmask 1043456
        %v184 = vsel %vm183, %v179, 0.0
        %v185 = vsel %vm183, %v180, 0.0
        %v186 = vadd.f32 %v184, %v185
        %187 = vadd.xlane.f32.xlu0 %v186
        %v188 = vpop.xlane.xlu0 %187
        %v189 = vmul.f32 %v188, 0.00390625
        %v191 = vrot.slane %v189, 7
        %vm193 = vcmask 1040384
        %v194 = vsel %vm193, 0.0, %v191
        %vm195 = vcmask 1044480
        %v196 = vsel %vm195, %v194, 0.0
        %s197 = sld [smem:[#allocation2]]
        %v198 = vstv %s197
        %v199 = vmul.f32 %v198, %v196
        %s200 = sld [smem:[#allocation2 + $0x1]]
        %v201 = vstv %s200
        %v202 = vmul.f32 %v201, %v196
        %v204 = vrot.slane %v202, 1
        %v206 = vadd.f32 %v199, %v204
        %s207 = sld [smem:[#allocation2 + $0x2]]
        %v208 = vstv %s207
        %v209 = vmul.f32 %v208, %v196
        %v211 = vrot.slane %v209, 2
        %v213 = vadd.f32 %v206, %v211
        %s214 = sld [smem:[#allocation2 + $0x3]]
        %v215 = vstv %s214
        %v216 = vadd.f32 %v213, %v215
        %v217 = vxor.u32 %v216, 2147483648
        %v218 = vmul.f32 %v217, 1.442695
        %v219 = vpow.pop %v218
        %v220 = vadd.f32 %v219, 1.0
        %v221 = vrcp.pop %v220
        %v222 = vmul.f32 %v220, %v221
        %v223 = vsub.f32 1.0, %v222
        %v224 = vmul.f32 %v221, %v223
        %v225 = vadd.f32 %v221, %v224
        %vm226 = vweird.f32 %v220
        %vm227 = vweird.f32 %v221
        %vm228 = vmor %vm226, %vm227
        %v229 = vsel %vm228, %v221, %v225
        %v230 = vand.u32 2147483647, %v220
        %vm231 = vcmp.eq.f32.partialorder %v230, 8.507059e+37
        %v232 = vand.u32 %v220, 2147483648
        %v233 = vor.u32 1.1754944e-38, %v232
        %v234 = vsel %vm231, %v233, %v229
        %v235 = vmul.f32 1.0, %v234
        %237 = vset.pattern.permute.xlu0 0
        %238 = vperm.xlu0 %237, %v235
        %v239 = vpop.permute.xlu0 %238
        %v241 = vunpack.c.l.s4 839922192
        %v242 = vunpack.c.0.s8 %v241
        %v243 = vperm.slane %v239, %v242
        %v245 = vmul.f32 %v176, %v243
        %246 = vst [vmem:[%s175] sm:$0xff] %v245
        %s247 = sand.u32 %s75, 1
        %s248 = scalar_lea.sflag [#allocation4], %s247
        %s249 = sand.u32 %s75, 1
        %s250 = smul.addr %s249, 8
        %s251 = scalar_lea.vmem [#allocation7], %s250
        // Predicated region
        $region37: #{tpu_custom_call.1} parent=27 // pred_check
          %p252 = pneg %p85
        $region38: #{tpu_custom_call.1} parent=27 // pred_check_branch
          %254 = sbr.rel (%p252) target = $region40
        $region39: #{tpu_custom_call.1} parent=27 // pred_region
          %256 = vsyncadd %s248, 0
          %s257 = smul.addr %s20, 2
          %s258 = smul.addr %s257, 4
          %s259 = scalar_lea.hbm %s2, %s258
          %s261 = sshll.u32 %s251, 4
          %s262 = int_to_ptr.vmem [resolvable:$true] %s261
          %s263 = sshll.u32 %s259, 4
          %s264 = int_to_ptr.hbm [resolvable:$true] %s263
          %266 = dma.vmem_to_hbm [thread:$0]  %s262, 128, %s264, %s248
        $region40: #{tpu_custom_call.1} parent=27 // pred_fallthru
          _
      $region28: #{tpu_custom_call.1} parent=5 // pred_fallthru
        _
      %p267 = scmp.le.s32.totalorder 2, %s15
      // Predicated region
      $region41: #{tpu_custom_call.1} parent=5 // pred_check
        %p268 = pneg %p267
      $region42: #{tpu_custom_call.1} parent=5 // pred_check_branch
        %270 = sbr.rel (%p268) target = $region44
      $region43: #{tpu_custom_call.1} parent=5 // pred_region
        %s271 = ssub.s32 %s15, 2
        // Predicated region
        $region45: #{tpu_custom_call.1} parent=43 // pred_check
          %p272 = pneg %p91
        $region46: #{tpu_custom_call.1} parent=43 // pred_check_branch
          %274 = sbr.rel (%p272) target = $region48
        $region47: #{tpu_custom_call.1} parent=43 // pred_region
          %s275 = sand.u32 %s76, 1
          %s276 = scalar_lea.sflag [#allocation4], %s275
          %s277 = sand.u32 %s76, 1
          %s278 = smul.addr %s277, 8
          %s279 = scalar_lea.vmem [#allocation7], %s278
          %281 = dma.done %s276, 128
        $region48: #{tpu_custom_call.1} parent=43 // pred_fallthru
          _
      $region44: #{tpu_custom_call.1} parent=5 // pred_fallthru
        _
    $region6: #{tpu_custom_call.1} parent=1 // loop_footer
      %s19 = sadd.s32 1, %s15
    $region7: #{tpu_custom_call.1} parent=1 // loop_footer_branch
      %14 = sbr.rel target = $region3
    $region8: #{tpu_custom_call.1} parent=1 // loop_exit
      _
    %282 = vsyncpa [#allocation3], 1
    %s283 = scalar_lea.sflag [#allocation3], 1
    %284 = vsyncpa %s283, 1
    %285 = vsyncpa [#allocation4], 1
    %s286 = scalar_lea.sflag [#allocation4], 1
    %287 = vsyncpa %s286, 1
    %288 = vsyncpa [#allocation5], 1
    %s289 = scalar_lea.sflag [#allocation5], 1
    %290 = vsyncpa %s289, 1

</llo_original>
